<compile_context>
chip_gen: v6e
topology: v6e:2x2x1
jax: 0.10.0
libtpu: 0.0.40
codegen_flags: <defaults>
</compile_context>

<pallas_src>
import jax
import jax.numpy as jnp
from jax import lax
from jax.experimental import pallas as pl
from jax.experimental.pallas import tpu as pltpu


# ---------------------------------------------------------------------------
# Kernel
# ---------------------------------------------------------------------------
def _stage(x3d, w_ref, shift_ref):
    """One 3x3 conv + BN + ReLU stage, lane-dense.

    x3d:       (nb, H, W*C_in) value (MXU dtype)
    w_ref:     (3, W*C_in, W*C_out) block-banded weights (BN scale folded in)
    shift_ref: (1, W*C_out) f32 folded conv-bias + BN shift
    returns:   (nb, H, W*C_out) f32
    """
    nb, h, wc_in = x3d.shape
    wc_out = w_ref.shape[-1]

    # Vertical (dy) taps: one-row sublane shifts with zero rows at the image
    # borders (SAME padding).  Horizontal (dx) taps are inside the banded W.
    zrow = jnp.zeros((nb, 1, wc_in), x3d.dtype)
    up = jnp.concatenate([zrow, x3d[:, :-1, :]], axis=1)   # input row h-1
    dn = jnp.concatenate([x3d[:, 1:, :], zrow], axis=1)    # input row h+1

    m = nb * h
    acc = jnp.dot(up.reshape(m, wc_in), w_ref[0],
                  preferred_element_type=jnp.float32)
    acc += jnp.dot(x3d.reshape(m, wc_in), w_ref[1],
                   preferred_element_type=jnp.float32)
    acc += jnp.dot(dn.reshape(m, wc_in), w_ref[2],
                   preferred_element_type=jnp.float32)

    # Lane-dense epilogue: folded bias/BN shift + ReLU on (m, W*C_out) f32.
    y = jnp.maximum(acc + shift_ref[...], 0.0)
    return y.reshape(nb, h, wc_out)


def _fused_conv_block_kernel(x_ref, w1_ref, t1_ref, w2_ref, t2_ref, o_ref):
    """nb images per step: (3x3 conv + BN + ReLU) x 2, fully fused in VMEM."""
    x = x_ref[...]                                  # (nb, H, W*C_in)
    y1 = _stage(x, w1_ref, t1_ref)                  # (nb, H, W*C_out) f32
    y1 = y1.astype(w2_ref.dtype)                    # bf16 path when enabled
    y2 = _stage(y1, w2_ref, t2_ref)                 # intermediate never hits HBM
    o_ref[...] = y2.astype(o_ref.dtype)


# ---------------------------------------------------------------------------
# Wrapper
# ---------------------------------------------------------------------------
def conv_block_pallas(x_nhwc, kp1, kp2, *, images_per_step=None,
                      mxu_dtype=jnp.float32):
    """x_nhwc: (N, H, W, C_in). Returns (N, H, W, C_out)."""
    N, H, W, C_in = x_nhwc.shape
    C_out = kp1["shift"].shape[-1] // W

    # Fold batch into each grid step, but keep >= 2 parallel steps when
    # possible so v7x megacore can balance both TensorCores.
    nb = images_per_step
    if nb is None:
        nb = 1
        for cand in range(N // 2, 0, -1):
            if N % cand == 0:
                nb = cand
                break
    assert N % nb == 0, "batch must divide images_per_step"
    grid = (N // nb,)

    # Lane-dense input view (free metadata reshape: last two dims merged).
    x2d = x_nhwc.reshape(N, H, W * C_in).astype(mxu_dtype)
    w1 = kp1["w"].astype(mxu_dtype)
    w2 = kp2["w"].astype(mxu_dtype)

    out = pl.pallas_call(
        _fused_conv_block_kernel,
        out_shape=jax.ShapeDtypeStruct((N, H, W * C_out), x_nhwc.dtype),
        grid_spec=pltpu.PrefetchScalarGridSpec(
            num_scalar_prefetch=0,
            grid=grid,
            in_specs=[
                pl.BlockSpec((nb, H, W * C_in), lambda n: (n, 0, 0)),
                pl.BlockSpec(w1.shape, lambda n: (0, 0, 0)),   # resident
                pl.BlockSpec(kp1["shift"].shape, lambda n: (0, 0)),
                pl.BlockSpec(w2.shape, lambda n: (0, 0, 0)),   # resident
                pl.BlockSpec(kp2["shift"].shape, lambda n: (0, 0)),
            ],
            out_specs=pl.BlockSpec((nb, H, W * C_out), lambda n: (n, 0, 0)),
        ),
        compiler_params=pltpu.CompilerParams(
            dimension_semantics=("parallel",)),
    )(x2d, w1, kp1["shift"], w2, kp2["shift"])

    return out.reshape(N, H, W, C_out)   # free metadata reshape (lane split)


def conv_block_forward(x_nchw, kp1, kp2, **kw):
    """PyTorch NCHW in/out; compute in lane-dense NHWC inside the kernel."""
    x = jnp.transpose(x_nchw, (0, 2, 3, 1))   # NCHW -> NHWC
    y = conv_block_pallas(x, kp1, kp2, **kw)
    return jnp.transpose(y, (0, 3, 1, 2))     # NHWC -> NCHW


# ---------------------------------------------------------------------------
# Parameters
# ---------------------------------------------------------------------------
def init_conv_block_params(key, ch_in, ch_out):
    """Deterministic synthetic raw parameters for the two conv+BN stages."""
    k1, k2 = jax.random.split(key)

    def raw(k, cin, cout):
        kw, kb, kg, kbe, km, kv = jax.random.split(k, 6)
        return dict(
            w=jax.random.normal(kw, (3, 3, cin, cout), jnp.float32) * 0.1,  # HWIO
            b=jax.random.normal(kb, (cout,), jnp.float32) * 0.1,
            gamma=1.0 + 0.1 * jax.random.normal(kg, (cout,), jnp.float32),
            beta=0.1 * jax.random.normal(kbe, (cout,), jnp.float32),
            mean=0.1 * jax.random.normal(km, (cout,), jnp.float32),
            var=jnp.abs(jax.random.normal(kv, (cout,), jnp.float32)) + 0.5,
        )

    return raw(k1, ch_in, ch_out), raw(k2, ch_out, ch_out)


def prepare_kernel_params(p, W, eps=1e-5):
    """Build block-banded lane-dense weights + folded scale/shift."""
    w = p["w"]                                   # (3, 3, cin, cout) HWIO
    _, kw, cin, cout = w.shape
    scale = p["gamma"] / jnp.sqrt(p["var"] + eps)                 # (cout,)
    shift = p["beta"] - p["mean"] * scale + p["b"] * scale        # bias folded

    # Block-banded per-dy weight: W_dy[wi*cin+ci, wo*cout+co] = w[dy, wi-wo+1, ci, co]
    # (zero outside the 3-wide band -> SAME horizontal padding handled exactly).
    wi = jnp.arange(W)[:, None]
    wo = jnp.arange(W)[None, :]
    dx = wi - wo + 1
    valid = ((dx >= 0) & (dx < kw)).astype(w.dtype)               # (W, W)
    blocks = w[:, jnp.clip(dx, 0, kw - 1)]                        # (3, W, W, cin, cout)
    blocks = blocks * valid[None, :, :, None, None]
    banded = blocks.transpose(0, 1, 3, 2, 4).reshape(3, W * cin, W * cout)

    # Fold BN scale into the weight columns (exact: conv is linear).
    banded = banded * jnp.tile(scale, W)[None, None, :]
    return dict(w=banded, shift=jnp.tile(shift, W)[None, :])      # (1, W*cout)


# ---------------------------------------------------------------------------
# Pure-JAX reference
# ---------------------------------------------------------------------------
def _reference_forward(x_nchw, p1, p2, eps=1e-5):
    x = jnp.transpose(x_nchw, (0, 2, 3, 1))

    def stage(x, p):
        y = lax.conv_general_dilated(
            x, p["w"], window_strides=(1, 1), padding="SAME",
            dimension_numbers=("NHWC", "HWIO", "NHWC"))
        y = y + p["b"]
        y = (y - p["mean"]) / jnp.sqrt(p["var"] + eps) * p["gamma"] + p["beta"]
        return jnp.maximum(y, 0.0)

    y = stage(stage(x, p1), p2)
    return jnp.transpose(y, (0, 3, 1, 2))


if __name__ == "__main__":
    key = jax.random.PRNGKey(0)
    k_x, k_p = jax.random.split(key)

    N, C_in, C_out, H, W = 2, 4, 8, 16, 16
    x = jax.random.normal(k_x, (N, C_in, H, W), jnp.float32)

    p1, p2 = init_conv_block_params(k_p, C_in, C_out)
    kp1 = prepare_kernel_params(p1, W)
    kp2 = prepare_kernel_params(p2, W)

    ref = jax.block_until_ready(_reference_forward(x, p1, p2))

    # f32 path: exact-precision check.
    out = jax.block_until_ready(conv_block_forward(x, kp1, kp2))
    if not jnp.allclose(out, ref, atol=1e-4, rtol=1e-4):
        raise AssertionError("Pallas conv_block (f32) mismatch vs reference")

    # bf16 MXU-input path (f32 accumulation + f32 epilogue): reduced precision.
    out_bf16 = jax.block_until_ready(
        conv_block_forward(x, kp1, kp2, mxu_dtype=jnp.bfloat16))
    if not jnp.allclose(out_bf16, ref, atol=1e-1, rtol=1e-1):
        raise AssertionError("Pallas conv_block (bf16) mismatch vs reference")

    print("KERNEL_OK")
</pallas_src>

<mosaic_0001>
module attributes {stable_mosaic.version = 11 : i64} {
  func.func @_fused_conv_block_kernel(%arg0: i32, %arg1: memref<1x16x64xf32, #tpu.memory_space<vmem>>, %arg2: memref<3x64x128xf32, #tpu.memory_space<vmem>>, %arg3: memref<1x128xf32, #tpu.memory_space<vmem>>, %arg4: memref<3x128x128xf32, #tpu.memory_space<vmem>>, %arg5: memref<1x128xf32, #tpu.memory_space<vmem>>, %arg6: memref<1x16x128xf32, #tpu.memory_space<vmem>>) attributes {dimension_semantics = [#tpu.dimension_semantics<parallel>], iteration_bounds = array<i64: 2>, scalar_prefetch = 0 : i64, scratch_operands = 0 : i64, tpu.core_type = #tpu.core_type<tc>, window_params = [{transform_indices = @transform_0, window_bounds = array<i64: 1, 16, 64>}, {pipeline_mode = #tpu.pipeline_mode<synchronous>, transform_indices = @transform_1, window_bounds = array<i64: 3, 64, 128>}, {pipeline_mode = #tpu.pipeline_mode<synchronous>, transform_indices = @transform_2, window_bounds = array<i64: 1, 128>}, {pipeline_mode = #tpu.pipeline_mode<synchronous>, transform_indices = @transform_3, window_bounds = array<i64: 3, 128, 128>}, {pipeline_mode = #tpu.pipeline_mode<synchronous>, transform_indices = @transform_4, window_bounds = array<i64: 1, 128>}, {transform_indices = @transform_5, window_bounds = array<i64: 1, 16, 128>}]} {
    %c0 = arith.constant 0 : index
    %c0_0 = arith.constant 0 : index
    %c0_1 = arith.constant 0 : index
    %0 = vector.load %arg1[%c0, %c0_0, %c0_1] : memref<1x16x64xf32, #tpu.memory_space<vmem>>, vector<1x16x64xf32>
    %cst = arith.constant 0.000000e+00 : f32
    %1 = vector.broadcast %cst : f32 to vector<1x1x64xf32>
    %2 = vector.extract_strided_slice %0 {offsets = [0, 0, 0], sizes = [1, 15, 64], strides = [1, 1, 1]} : vector<1x16x64xf32> to vector<1x15x64xf32>
    %3 = tpu.concatenate %1, %2 in 1 : vector<1x1x64xf32>, vector<1x15x64xf32> -> vector<1x16x64xf32>
    %4 = vector.extract_strided_slice %0 {offsets = [0, 1, 0], sizes = [1, 15, 64], strides = [1, 1, 1]} : vector<1x16x64xf32> to vector<1x15x64xf32>
    %5 = tpu.concatenate %4, %1 in 1 : vector<1x15x64xf32>, vector<1x1x64xf32> -> vector<1x16x64xf32>
    %6 = vector.shape_cast %3 : vector<1x16x64xf32> to vector<16x64xf32>
    %c0_2 = arith.constant 0 : index
    %c0_3 = arith.constant 0 : index
    %c0_4 = arith.constant 0 : index
    %7 = vector.load %arg2[%c0_2, %c0_3, %c0_4] : memref<3x64x128xf32, #tpu.memory_space<vmem>>, vector<1x64x128xf32>
    %8 = vector.shape_cast %7 : vector<1x64x128xf32> to vector<64x128xf32>
    %cst_5 = arith.constant dense<0.000000e+00> : vector<16x128xf32>
    %9 = tpu.matmul %6, %8, %cst_5 {dimension_numbers = #tpu.dot_dimension_numbers<[1], [0], [0], [1], [0, 0, 1, 1], [], []>} : vector<16x64xf32>, vector<64x128xf32>, vector<16x128xf32> -> vector<16x128xf32>
    %10 = vector.shape_cast %0 : vector<1x16x64xf32> to vector<16x64xf32>
    %c1 = arith.constant 1 : index
    %c0_6 = arith.constant 0 : index
    %c0_7 = arith.constant 0 : index
    %11 = vector.load %arg2[%c1, %c0_6, %c0_7] : memref<3x64x128xf32, #tpu.memory_space<vmem>>, vector<1x64x128xf32>
    %12 = vector.shape_cast %11 : vector<1x64x128xf32> to vector<64x128xf32>
    %cst_8 = arith.constant dense<0.000000e+00> : vector<16x128xf32>
    %13 = tpu.matmul %10, %12, %cst_8 {dimension_numbers = #tpu.dot_dimension_numbers<[1], [0], [0], [1], [0, 0, 1, 1], [], []>} : vector<16x64xf32>, vector<64x128xf32>, vector<16x128xf32> -> vector<16x128xf32>
    %14 = arith.addf %9, %13 : vector<16x128xf32>
    %15 = vector.shape_cast %5 : vector<1x16x64xf32> to vector<16x64xf32>
    %c2 = arith.constant 2 : index
    %c0_9 = arith.constant 0 : index
    %c0_10 = arith.constant 0 : index
    %16 = vector.load %arg2[%c2, %c0_9, %c0_10] : memref<3x64x128xf32, #tpu.memory_space<vmem>>, vector<1x64x128xf32>
    %17 = vector.shape_cast %16 : vector<1x64x128xf32> to vector<64x128xf32>
    %cst_11 = arith.constant dense<0.000000e+00> : vector<16x128xf32>
    %18 = tpu.matmul %15, %17, %cst_11 {dimension_numbers = #tpu.dot_dimension_numbers<[1], [0], [0], [1], [0, 0, 1, 1], [], []>} : vector<16x64xf32>, vector<64x128xf32>, vector<16x128xf32> -> vector<16x128xf32>
    %19 = arith.addf %14, %18 : vector<16x128xf32>
    %c0_12 = arith.constant 0 : index
    %c0_13 = arith.constant 0 : index
    %20 = vector.load %arg3[%c0_12, %c0_13] : memref<1x128xf32, #tpu.memory_space<vmem>>, vector<1x128xf32>
    %21 = vector.broadcast %20 : vector<1x128xf32> to vector<16x128xf32>
    %22 = arith.addf %19, %21 : vector<16x128xf32>
    %cst_14 = arith.constant 0.000000e+00 : f32
    %23 = vector.broadcast %cst_14 : f32 to vector<16x128xf32>
    %24 = arith.maximumf %22, %23 : vector<16x128xf32>
    %25 = vector.shape_cast %24 : vector<16x128xf32> to vector<1x16x128xf32>
    %cst_15 = arith.constant 0.000000e+00 : f32
    %26 = vector.broadcast %cst_15 : f32 to vector<1x1x128xf32>
    %27 = vector.extract_strided_slice %25 {offsets = [0, 0, 0], sizes = [1, 15, 128], strides = [1, 1, 1]} : vector<1x16x128xf32> to vector<1x15x128xf32>
    %28 = tpu.concatenate %26, %27 in 1 : vector<1x1x128xf32>, vector<1x15x128xf32> -> vector<1x16x128xf32>
    %29 = vector.extract_strided_slice %25 {offsets = [0, 1, 0], sizes = [1, 15, 128], strides = [1, 1, 1]} : vector<1x16x128xf32> to vector<1x15x128xf32>
    %30 = tpu.concatenate %29, %26 in 1 : vector<1x15x128xf32>, vector<1x1x128xf32> -> vector<1x16x128xf32>
    %31 = vector.shape_cast %28 : vector<1x16x128xf32> to vector<16x128xf32>
    %c0_16 = arith.constant 0 : index
    %c0_17 = arith.constant 0 : index
    %c0_18 = arith.constant 0 : index
    %32 = vector.load %arg4[%c0_16, %c0_17, %c0_18] : memref<3x128x128xf32, #tpu.memory_space<vmem>>, vector<1x128x128xf32>
    %33 = vector.shape_cast %32 : vector<1x128x128xf32> to vector<128x128xf32>
    %cst_19 = arith.constant dense<0.000000e+00> : vector<16x128xf32>
    %34 = tpu.matmul %31, %33, %cst_19 {dimension_numbers = #tpu.dot_dimension_numbers<[1], [0], [0], [1], [0, 0, 1, 1], [], []>} : vector<16x128xf32>, vector<128x128xf32>, vector<16x128xf32> -> vector<16x128xf32>
    %35 = vector.shape_cast %25 : vector<1x16x128xf32> to vector<16x128xf32>
    %c1_20 = arith.constant 1 : index
    %c0_21 = arith.constant 0 : index
    %c0_22 = arith.constant 0 : index
    %36 = vector.load %arg4[%c1_20, %c0_21, %c0_22] : memref<3x128x128xf32, #tpu.memory_space<vmem>>, vector<1x128x128xf32>
    %37 = vector.shape_cast %36 : vector<1x128x128xf32> to vector<128x128xf32>
    %cst_23 = arith.constant dense<0.000000e+00> : vector<16x128xf32>
    %38 = tpu.matmul %35, %37, %cst_23 {dimension_numbers = #tpu.dot_dimension_numbers<[1], [0], [0], [1], [0, 0, 1, 1], [], []>} : vector<16x128xf32>, vector<128x128xf32>, vector<16x128xf32> -> vector<16x128xf32>
    %39 = arith.addf %34, %38 : vector<16x128xf32>
    %40 = vector.shape_cast %30 : vector<1x16x128xf32> to vector<16x128xf32>
    %c2_24 = arith.constant 2 : index
    %c0_25 = arith.constant 0 : index
    %c0_26 = arith.constant 0 : index
    %41 = vector.load %arg4[%c2_24, %c0_25, %c0_26] : memref<3x128x128xf32, #tpu.memory_space<vmem>>, vector<1x128x128xf32>
    %42 = vector.shape_cast %41 : vector<1x128x128xf32> to vector<128x128xf32>
    %cst_27 = arith.constant dense<0.000000e+00> : vector<16x128xf32>
    %43 = tpu.matmul %40, %42, %cst_27 {dimension_numbers = #tpu.dot_dimension_numbers<[1], [0], [0], [1], [0, 0, 1, 1], [], []>} : vector<16x128xf32>, vector<128x128xf32>, vector<16x128xf32> -> vector<16x128xf32>
    %44 = arith.addf %39, %43 : vector<16x128xf32>
    %c0_28 = arith.constant 0 : index
    %c0_29 = arith.constant 0 : index
    %45 = vector.load %arg5[%c0_28, %c0_29] : memref<1x128xf32, #tpu.memory_space<vmem>>, vector<1x128xf32>
    %46 = vector.broadcast %45 : vector<1x128xf32> to vector<16x128xf32>
    %47 = arith.addf %44, %46 : vector<16x128xf32>
    %cst_30 = arith.constant 0.000000e+00 : f32
    %48 = vector.broadcast %cst_30 : f32 to vector<16x128xf32>
    %49 = arith.maximumf %47, %48 : vector<16x128xf32>
    %50 = vector.shape_cast %49 : vector<16x128xf32> to vector<1x16x128xf32>
    %c0_31 = arith.constant 0 : index
    %c0_32 = arith.constant 0 : index
    %c0_33 = arith.constant 0 : index
    %51 = vector.load %arg6[%c0_31, %c0_32, %c0_33] : memref<1x16x128xf32, #tpu.memory_space<vmem>>, vector<1x16x128xf32>
    tpu.vector_store %arg6[%c0_31, %c0_32, %c0_33], %50 {strides = array<i32>} : memref<1x16x128xf32, #tpu.memory_space<vmem>>, vector<1x16x128xf32>,
    return
  }
  func.func @transform_0(%arg0: i32) -> (i32, i32, i32) {
    %c0_i32 = arith.constant 0 : i32
    %c0_i32_0 = arith.constant 0 : i32
    %c0_i32_1 = arith.constant 0 : i32
    return %arg0, %c0_i32, %c0_i32_0 : i32, i32, i32
  }
  func.func @transform_1(%arg0: i32) -> (i32, i32, i32) {
    %c0_i32 = arith.constant 0 : i32
    %c0_i32_0 = arith.constant 0 : i32
    %c0_i32_1 = arith.constant 0 : i32
    %c0_i32_2 = arith.constant 0 : i32
    return %c0_i32, %c0_i32_0, %c0_i32_1 : i32, i32, i32
  }
  func.func @transform_2(%arg0: i32) -> (i32, i32) {
    %c0_i32 = arith.constant 0 : i32
    %c0_i32_0 = arith.constant 0 : i32
    %c0_i32_1 = arith.constant 0 : i32
    return %c0_i32, %c0_i32_0 : i32, i32
  }
  func.func @transform_3(%arg0: i32) -> (i32, i32, i32) {
    %c0_i32 = arith.constant 0 : i32
    %c0_i32_0 = arith.constant 0 : i32
    %c0_i32_1 = arith.constant 0 : i32
    %c0_i32_2 = arith.constant 0 : i32
    return %c0_i32, %c0_i32_0, %c0_i32_1 : i32, i32, i32
  }
  func.func @transform_4(%arg0: i32) -> (i32, i32) {
    %c0_i32 = arith.constant 0 : i32
    %c0_i32_0 = arith.constant 0 : i32
    %c0_i32_1 = arith.constant 0 : i32
    return %c0_i32, %c0_i32_0 : i32, i32
  }
  func.func @transform_5(%arg0: i32) -> (i32, i32, i32) {
    %c0_i32 = arith.constant 0 : i32
    %c0_i32_0 = arith.constant 0 : i32
    %c0_i32_1 = arith.constant 0 : i32
    return %arg0, %c0_i32, %c0_i32_0 : i32, i32, i32
  }
}

</mosaic_0001>

<llo_original>
// kernel: tpu_custom_call.1
$region0: #{tpu_custom_call.1}
  #allocation0 [shape = 'u32[]', space=smem, size = 0x4, offset = 0x4, fixed_abs, tag = 'smem constant byte address 0x4 - core index']
  #allocation1 [shape = 'u32[144,128]{1,0:T(1,128)}', space=vmem, size = 0x12000, scoped, tag = 'internal scratch']
  %s0 = inlined_call_operand.hbm [shape: f32[2,16,64], index: 0, kind: input, shape index: {}]
  %s1 = inlined_call_operand.hbm [shape: f32[3,64,128], index: 1, kind: input, shape index: {}]
  %s2 = inlined_call_operand.vmem [shape: f32[1,128], index: 2, kind: input, shape index: {}]
  %s3 = inlined_call_operand.hbm [shape: f32[3,128,128], index: 3, kind: input, shape index: {}]
  %s4 = inlined_call_operand.vmem [shape: f32[1,128], index: 4, kind: input, shape index: {}]
  %s5 = inlined_call_operand.hbm [shape: f32[2,16,128], index: 5, kind: output, shape index: {}]
  %s6 = sld [smem:[#allocation0]]
  $region65: #{tpu_custom_call.1} parent=0
    _
  %s8 = ssub.s32 1, %s6
  %s9 = scalar_select 0, %s8, %s6
  $region1: #{tpu_custom_call.1} parent=0
    #allocation2 [shape = 'u8[16384]{0}', space=vmem, size = 0x4000, scoped, tag = 'input window, operand 0']
    #allocation3 [shape = 's32[2]{0}', space=sflag, size = 0x8, scoped, tag = 'scoped memory for tpu_custom_call.1']
    #allocation4 [shape = 's32[2]{0}', space=sflag, size = 0x8, scoped, tag = 'scoped memory for tpu_custom_call.1']
    #allocation5 [shape = 'u8[98304]{0}', space=vmem, size = 0x18000, scoped, tag = 'input window, operand 1, single buffered']
    #allocation6 [shape = 's32[1]{0}', space=sflag, size = 0x4, scoped, tag = 'scoped memory for tpu_custom_call.1']
    #allocation7 [shape = 'u8[196608]{0}', space=vmem, size = 0x30000, scoped, tag = 'input window, operand 3, single buffered']
    #allocation8 [shape = 'u8[16384]{0}', space=vmem, size = 0x4000, scoped, tag = 'output window, operand 0']
    %10 = vsyncpa [#allocation3], 0
    %s11 = scalar_lea.sflag [#allocation3], 1
    %12 = vsyncpa %s11, 0
    %13 = vsyncpa [#allocation6], 0
    %14 = vsyncpa [#allocation4], 0
    %s15 = scalar_lea.sflag [#allocation4], 1
    %16 = vsyncpa %s15, 0
    loop: start=0, step=1, limit=4
    $region2: #{tpu_custom_call.1} parent=1 // loop_pre_header
      _
    $region3: #{tpu_custom_call.1} parent=1 // loop_header
      %s18 = sphi 0, %s22
      %p19 = scmp.ge.s32.totalorder %s18, 4
      %s28 = sphi 0, %s30
      %s31 = sphi 0, %s28
      %s32 = sphi 0, %s31
      %s48 = sphi 0, %s32
      %s52 = sphi 0, %s52
      %s54 = sphi 0, %s52
      %s55 = sphi 0, %s54
      %s69 = sphi 0, %s55
      %s73 = sphi 0, %s73
      %s75 = sphi 0, %s73
      %s76 = sphi 0, %s75
      %s90 = sphi 0, %s76
      %s94 = sphi 0, %s94
      %s96 = sphi 0, %s94
      %s97 = sphi 0, %s96
      %s111 = sphi 0, %s97
      %s115 = sphi 0, %s115
      %s117 = sphi 0, %s115
      %s118 = sphi 0, %s117
      %s132 = sphi 0, %s118
      %s138 = sphi 0, %s140
      %s141 = sphi 0, %s138
      %s142 = sphi 0, %s141
      %s158 = sphi 0, %s142
    $region4: #{tpu_custom_call.1} parent=1 // loop_header_branch
      %21 = sbr.rel (%p19) target = $region8
    $region5: #{tpu_custom_call.1} parent=1 // loop_body
      %s23 = ssub.s32 %s18, 1
      %s24 = ssub.s32 %s18, 2
      %s25 = sadd.s32 %s18, 1
      %s26 = ssub.s32 %s18, %s25
      %p27 = scmp.eq.s32.totalorder %s26, 0
      %s29 = sadd.s32 %s28, 1
      %s30 = scalar_select %p27, %s28, %s29
      %p33 = pneg %p27
      %p34 = scmp.eq.s32.totalorder %s18, 1
      %p35 = por %p33, %p34
      %p36 = scmp.ne.s32.totalorder %s28, %s31
      %p37 = scmp.eq.s32.totalorder %s18, 0
      %p38 = por %p36, %p37
      %p39 = scmp.ne.s32.totalorder %s28, %s31
      %p40 = scmp.eq.s32.totalorder %s23, 1
      %p41 = por %p39, %p40
      %p42 = scmp.ne.s32.totalorder %s31, %s32
      %p43 = scmp.eq.s32.totalorder %s23, 0
      %p44 = por %p42, %p43
      %p45 = scmp.ne.s32.totalorder %s31, %s32
      %p46 = scmp.eq.s32.totalorder %s24, 1
      %p47 = por %p45, %p46
      %p49 = scmp.ne.s32.totalorder %s32, %s48
      %p50 = scmp.eq.s32.totalorder %s24, 0
      %p51 = por %p49, %p50
      %s53 = sadd.s32 %s52, 1
      %p56 = scmp.eq.s32.totalorder %s18, 1
      %p57 = scmp.ne.s32.totalorder %s52, %s54
      %p58 = scmp.eq.s32.totalorder %s18, 0
      %p59 = por %p57, %p58
      %p60 = scmp.ne.s32.totalorder %s52, %s54
      %p61 = scmp.eq.s32.totalorder %s23, 1
      %p62 = por %p60, %p61
      %p63 = scmp.ne.s32.totalorder %s54, %s55
      %p64 = scmp.eq.s32.totalorder %s23, 0
      %p65 = por %p63, %p64
      %p66 = scmp.ne.s32.totalorder %s54, %s55
      %p67 = scmp.eq.s32.totalorder %s24, 1
      %p68 = por %p66, %p67
      %p70 = scmp.ne.s32.totalorder %s55, %s69
      %p71 = scmp.eq.s32.totalorder %s24, 0
      %p72 = por %p70, %p71
      %s74 = sadd.s32 %s73, 1
      %p77 = scmp.eq.s32.totalorder %s18, 1
      %p78 = scmp.ne.s32.totalorder %s73, %s75
      %p79 = scmp.eq.s32.totalorder %s18, 0
      %p80 = por %p78, %p79
      %p81 = scmp.ne.s32.totalorder %s73, %s75
      %p82 = scmp.eq.s32.totalorder %s23, 1
      %p83 = por %p81, %p82
      %p84 = scmp.ne.s32.totalorder %s75, %s76
      %p85 = scmp.eq.s32.totalorder %s23, 0
      %p86 = por %p84, %p85
      %p87 = scmp.ne.s32.totalorder %s75, %s76
      %p88 = scmp.eq.s32.totalorder %s24, 1
      %p89 = por %p87, %p88
      %p91 = scmp.ne.s32.totalorder %s76, %s90
      %p92 = scmp.eq.s32.totalorder %s24, 0
      %p93 = por %p91, %p92
      %s95 = sadd.s32 %s94, 1
      %p98 = scmp.eq.s32.totalorder %s18, 1
      %p99 = scmp.ne.s32.totalorder %s94, %s96
      %p100 = scmp.eq.s32.totalorder %s18, 0
      %p101 = por %p99, %p100
      %p102 = scmp.ne.s32.totalorder %s94, %s96
      %p103 = scmp.eq.s32.totalorder %s23, 1
      %p104 = por %p102, %p103
      %p105 = scmp.ne.s32.totalorder %s96, %s97
      %p106 = scmp.eq.s32.totalorder %s23, 0
      %p107 = por %p105, %p106
      %p108 = scmp.ne.s32.totalorder %s96, %s97
      %p109 = scmp.eq.s32.totalorder %s24, 1
      %p110 = por %p108, %p109
      %p112 = scmp.ne.s32.totalorder %s97, %s111
      %p113 = scmp.eq.s32.totalorder %s24, 0
      %p114 = por %p112, %p113
      %s116 = sadd.s32 %s115, 1
      %p119 = scmp.eq.s32.totalorder %s18, 1
      %p120 = scmp.ne.s32.totalorder %s115, %s117
      %p121 = scmp.eq.s32.totalorder %s18, 0
      %p122 = por %p120, %p121
      %p123 = scmp.ne.s32.totalorder %s115, %s117
      %p124 = scmp.eq.s32.totalorder %s23, 1
      %p125 = por %p123, %p124
      %p126 = scmp.ne.s32.totalorder %s117, %s118
      %p127 = scmp.eq.s32.totalorder %s23, 0
      %p128 = por %p126, %p127
      %p129 = scmp.ne.s32.totalorder %s117, %s118
      %p130 = scmp.eq.s32.totalorder %s24, 1
      %p131 = por %p129, %p130
      %p133 = scmp.ne.s32.totalorder %s118, %s132
      %p134 = scmp.eq.s32.totalorder %s24, 0
      %p135 = por %p133, %p134
      %s136 = ssub.s32 %s18, %s25
      %p137 = scmp.eq.s32.totalorder %s136, 0
      %s139 = sadd.s32 %s138, 1
      %s140 = scalar_select %p137, %s138, %s139
      %p143 = pneg %p137
      %p144 = scmp.eq.s32.totalorder %s18, 1
      %p145 = por %p143, %p144
      %p146 = scmp.ne.s32.totalorder %s138, %s141
      %p147 = scmp.eq.s32.totalorder %s18, 0
      %p148 = por %p146, %p147
      %p149 = scmp.ne.s32.totalorder %s138, %s141
      %p150 = scmp.eq.s32.totalorder %s23, 1
      %p151 = por %p149, %p150
      %p152 = scmp.ne.s32.totalorder %s141, %s142
      %p153 = scmp.eq.s32.totalorder %s23, 0
      %p154 = por %p152, %p153
      %p155 = scmp.ne.s32.totalorder %s141, %s142
      %p156 = scmp.eq.s32.totalorder %s24, 1
      %p157 = por %p155, %p156
      %p159 = scmp.ne.s32.totalorder %s142, %s158
      %p160 = scmp.eq.s32.totalorder %s24, 0
      %p161 = por %p159, %p160
      %p162 = scmp.le.s32.totalorder 1, %s18
      %p163 = scmp.lt.s32.totalorder %s18, 3
      %p164 = pnand %p162, %p163
      %p165 = pneg %p164
      // Predicated region
      $region9: #{tpu_custom_call.1} parent=5 // pred_check
        _
      $region10: #{tpu_custom_call.1} parent=5 // pred_check_branch
        %167 = sbr.rel (%p164) target = $region12
      $region11: #{tpu_custom_call.1} parent=5 // pred_region
        %s168 = ssub.s32 %s18, 1
        // Predicated region
        $region13: #{tpu_custom_call.1} parent=11 // pred_check
          %p169 = pneg %p65
        $region14: #{tpu_custom_call.1} parent=11 // pred_check_branch
          %171 = sbr.rel (%p169) target = $region16
        $region15: #{tpu_custom_call.1} parent=11 // pred_region
          %s173 = ssub.s32 3072, 3072
          %174 = vsyncadd [#allocation6], %s173
          %s175 = sshll.u32 [#allocation5], 4
          %s176 = int_to_ptr.vmem [resolvable:$true] %s175
          %181 = dma.hbm_to_vmem [thread:$0]  %s1, 3072, %s176, [#allocation6], 128, 128, 8
        $region16: #{tpu_custom_call.1} parent=11 // pred_fallthru
          _
        // Predicated region
        $region17: #{tpu_custom_call.1} parent=11 // pred_check
          %p182 = pneg %p86
        $region18: #{tpu_custom_call.1} parent=11 // pred_check_branch
          %184 = sbr.rel (%p182) target = $region20
        $region19: #{tpu_custom_call.1} parent=11 // pred_region
          _
        $region20: #{tpu_custom_call.1} parent=11 // pred_fallthru
          _
        // Predicated region
        $region21: #{tpu_custom_call.1} parent=11 // pred_check
          %p185 = pneg %p107
        $region22: #{tpu_custom_call.1} parent=11 // pred_check_branch
          %187 = sbr.rel (%p185) target = $region24
        $region23: #{tpu_custom_call.1} parent=11 // pred_region
          %s189 = ssub.s32 6144, 6144
          %190 = vsyncadd [#allocation6], %s189
          %s191 = sshll.u32 [#allocation7], 4
          %s192 = int_to_ptr.vmem [resolvable:$true] %s191
          %197 = dma.hbm_to_vmem [thread:$0]  %s3, 6144, %s192, [#allocation6], 128, 128, 8
        $region24: #{tpu_custom_call.1} parent=11 // pred_fallthru
          _
        // Predicated region
        $region25: #{tpu_custom_call.1} parent=11 // pred_check
          %p198 = pneg %p128
        $region26: #{tpu_custom_call.1} parent=11 // pred_check_branch
          %200 = sbr.rel (%p198) target = $region28
        $region27: #{tpu_custom_call.1} parent=11 // pred_region
          _
        $region28: #{tpu_custom_call.1} parent=11 // pred_fallthru
          _
      $region12: #{tpu_custom_call.1} parent=5 // pred_fallthru
        _
      %p201 = scmp.lt.s32.totalorder %s18, 2
      // Predicated region
      $region29: #{tpu_custom_call.1} parent=5 // pred_check
        %p202 = pneg %p201
      $region30: #{tpu_custom_call.1} parent=5 // pred_check_branch
        %204 = sbr.rel (%p202) target = $region32
      $region31: #{tpu_custom_call.1} parent=5 // pred_region
        // Predicated region
        $region33: #{tpu_custom_call.1} parent=31 // pred_check
          %p205 = pneg %p38
        $region34: #{tpu_custom_call.1} parent=31 // pred_check_branch
          %207 = sbr.rel (%p205) target = $region36
        $region35: #{tpu_custom_call.1} parent=31 // pred_region
          %s208 = sand.u32 %s28, 1
          %s209 = scalar_lea.sflag [#allocation3], %s208
          %s210 = sand.u32 %s28, 1
          %s211 = smul.addr %s210, 16
          %s212 = scalar_lea.vmem [#allocation2], %s211
          %s214 = ssub.s32 256, 256
          %215 = vsyncadd %s209, %s214
          %s216 = smul.addr %s18, 2
          %s217 = smul.addr %s216, 128
          %s218 = scalar_lea.hbm %s0, %s217
          %s219 = sshll.u32 %s212, 4
          %s220 = int_to_ptr.vmem [resolvable:$true] %s219
          %225 = dma.hbm_to_vmem [thread:$0]  %s218, 256, %s220, %s209, 128, 128, 8
        $region36: #{tpu_custom_call.1} parent=31 // pred_fallthru
          _
      $region32: #{tpu_custom_call.1} parent=5 // pred_fallthru
        _
      %p226 = scmp.le.s32.totalorder 1, %s18
      %p227 = scmp.lt.s32.totalorder %s18, 3
      %p228 = pnand %p226, %p227
      %p229 = pneg %p228
      // Predicated region
      $region37: #{tpu_custom_call.1} parent=5 // pred_check
        _
      $region38: #{tpu_custom_call.1} parent=5 // pred_check_branch
        %231 = sbr.rel (%p228) target = $region40
      $region39: #{tpu_custom_call.1} parent=5 // pred_region
        %s232 = ssub.s32 %s18, 1
        %s233 = sand.u32 %s31, 1
        %s234 = scalar_lea.sflag [#allocation3], %s233
        %s235 = sand.u32 %s31, 1
        %s236 = smul.addr %s235, 16
        %s237 = scalar_lea.vmem [#allocation2], %s236
        // Predicated region
        $region41: #{tpu_custom_call.1} parent=39 // pred_check
          %p238 = pneg %p44
        $region42: #{tpu_custom_call.1} parent=39 // pred_check_branch
          %240 = sbr.rel (%p238) target = $region44
        $region43: #{tpu_custom_call.1} parent=39 // pred_region
          %241 = dma.done %s234, 256
        $region44: #{tpu_custom_call.1} parent=39 // pred_fallthru
          _
        // Predicated region
        $region45: #{tpu_custom_call.1} parent=39 // pred_check
          %p242 = pneg %p65
        $region46: #{tpu_custom_call.1} parent=39 // pred_check_branch
          %244 = sbr.rel (%p242) target = $region48
        $region47: #{tpu_custom_call.1} parent=39 // pred_region
          %245 = dma.done [#allocation6], 3072
        $region48: #{tpu_custom_call.1} parent=39 // pred_fallthru
          _
        // Predicated region
        $region49: #{tpu_custom_call.1} parent=39 // pred_check
          %p246 = pneg %p107
        $region50: #{tpu_custom_call.1} parent=39 // pred_check_branch
          %248 = sbr.rel (%p246) target = $region52
        $region51: #{tpu_custom_call.1} parent=39 // pred_region
          %249 = dma.done [#allocation6], 6144
        $region52: #{tpu_custom_call.1} parent=39 // pred_fallthru
          _
        %s250 = sand.u32 %s31, 1
        %s251 = scalar_lea.sflag [#allocation3], %s250
        %s252 = sand.u32 %s31, 1
        %s253 = smul.addr %s252, 16
        %s254 = scalar_lea.vmem [#allocation2], %s253
        %p255 = pneg %p44
        %p256 = pneg %p41
        %p257 = pneg %p65
        %p258 = pneg %p62
        %p259 = pneg %p86
        %p260 = pneg %p83
        %p261 = pneg %p107
        %p262 = pneg %p104
        %p263 = pneg %p128
        %p264 = pneg %p125
        %p265 = pneg %p154
        %p266 = pneg %p151
        %s267 = sand.u32 %s141, 1
        %s268 = scalar_lea.sflag [#allocation4], %s267
        %s269 = sand.u32 %s141, 1
        %s270 = smul.addr %s269, 16
        %s271 = scalar_lea.vmem [#allocation8], %s270
        %v272 = vld [vmem:[%s237] sm:$0xff]
        %v273 = vld [vmem:[%s237 + $0x8] sm:$0xff]
        %vm276 = vcmask 1040384
        %v277 = vrot.slane %v272, 7
        %v278 = vrot.slane %v273, 7
        %v279 = vsel %vm276, %v277, %v278
        %v281 = vsel %vm276, 0.0, %v277
        %vm282 = vcmask 1046528
        %v283 = vrot.slane %v272, 1
        %v284 = vrot.slane %v273, 1
        %v285 = vsel %vm282, %v283, %v284
        %v287 = vsel %vm282, %v284, 0.0
        %v288 = vld [vmem:[#allocation5] sm:$0xff]
        %v289 = vld [vmem:[#allocation5 + $0x8] sm:$0xff]
        %v290 = vld [vmem:[#allocation5 + $0x10] sm:$0xff]
        %v291 = vld [vmem:[#allocation5 + $0x18] sm:$0xff]
        %v292 = vld [vmem:[#allocation5 + $0x20] sm:$0xff]
        %v293 = vld [vmem:[#allocation5 + $0x28] sm:$0xff]
        %v294 = vld [vmem:[#allocation5 + $0x30] sm:$0xff]
        %v295 = vld [vmem:[#allocation5 + $0x38] sm:$0xff]
        %s296 = scalar_lea.vmem [#allocation5], 64
        %v297 = vld [vmem:[%s296] sm:$0xff]
        %v298 = vld [vmem:[%s296 + $0x8] sm:$0xff]
        %v299 = vld [vmem:[%s296 + $0x10] sm:$0xff]
        %v300 = vld [vmem:[%s296 + $0x18] sm:$0xff]
        %v301 = vld [vmem:[%s296 + $0x20] sm:$0xff]
        %v302 = vld [vmem:[%s296 + $0x28] sm:$0xff]
        %v303 = vld [vmem:[%s296 + $0x30] sm:$0xff]
        %v304 = vld [vmem:[%s296 + $0x38] sm:$0xff]
        %vm305 = vcmask 523264
        %v306 = vsel %vm305, %v272, 0
        %v308 = vsel %vm305, %v273, 0
        %310 = vmatprep.subr.mxu0 0.0
        %311 = vmatpush1.msra.mxu0 0.0
        %312 = vmatprep.subr.mxu0 0.0
        %313 = vmatpush1.msra.mxu0 0.0
        %314 = vmatprep.subr.mxu0 0.0
        %315 = vmatpush1.msra.mxu0 0.0
        %316 = vmatprep.subr.mxu0 0.0
        %317 = vmatpush1.msra.mxu0 0.0
        %318 = vmatprep.subr.mxu0 0.0
        %319 = vmatpush1.msra.mxu0 0.0
        %320 = vmatprep.subr.mxu0 0.0
        %321 = vmatpush1.msra.mxu0 0.0
        %322 = vmatprep.subr.mxu0 0.0
        %323 = vmatpush1.msra.mxu0 0.0
        %324 = vmatprep.subr.mxu0 0.0
        %325 = vmatpush1.msra.mxu0 0.0
        %326 = vmatprep.subr.mxu0 0.0
        %327 = vmatpush1.msra.mxu0 %v304
        %328 = vmatprep.subr.mxu0 0.0
        %329 = vmatpush1.msra.mxu0 %v303
        %330 = vmatprep.subr.mxu0 0.0
        %331 = vmatpush1.msra.mxu0 %v302
        %332 = vmatprep.subr.mxu0 0.0
        %333 = vmatpush1.msra.mxu0 %v301
        %334 = vmatprep.subr.mxu0 0.0
        %335 = vmatpush1.msra.mxu0 %v300
        %336 = vmatprep.subr.mxu0 0.0
        %337 = vmatpush1.msra.mxu0 %v299
        %338 = vmatprep.subr.mxu0 0.0
        %339 = vmatpush1.msra.mxu0 %v298
        %340 = vmatprep.subr.mxu0 0.0
        %341 = vmatpush1.msra.mxu0 %v297
        %342 = vmatprep.subr.mxu0 0.0
        %343 = vmatpush2.msra.mxu0 0.0
        %344 = vmatprep.subr.mxu0 0.0
        %345 = vmatpush2.msra.mxu0 0.0
        %346 = vmatprep.subr.mxu0 0.0
        %347 = vmatpush2.msra.mxu0 0.0
        %348 = vmatprep.subr.mxu0 0.0
        %349 = vmatpush2.msra.mxu0 0.0
        %350 = vmatprep.subr.mxu0 0.0
        %351 = vmatpush2.msra.mxu0 0.0
        %352 = vmatprep.subr.mxu0 0.0
        %353 = vmatpush2.msra.mxu0 0.0
        %354 = vmatprep.subr.mxu0 0.0
        %355 = vmatpush2.msra.mxu0 0.0
        %356 = vmatprep.subr.mxu0 0.0
        %357 = vmatpush2.msra.mxu0 0.0
        %358 = vmatprep.subr.mxu0 0.0
        %359 = vmatpush2.msra.mxu0 0.0
        %360 = vmatprep.subr.mxu0 0.0
        %361 = vmatpush2.msra.mxu0 0.0
        %362 = vmatprep.subr.mxu0 0.0
        %363 = vmatpush2.msra.mxu0 0.0
        %364 = vmatprep.subr.mxu0 0.0
        %365 = vmatpush2.msra.mxu0 0.0
        %366 = vmatprep.subr.mxu0 0.0
        %367 = vmatpush2.msra.mxu0 0.0
        %368 = vmatprep.subr.mxu0 0.0
        %369 = vmatpush2.msra.mxu0 0.0
        %370 = vmatprep.subr.mxu0 0.0
        %371 = vmatpush2.msra.mxu0 0.0
        %372 = vmatprep.subr.mxu0 0.0
        %373 = vmatpush2.msra.mxu0 0.0
        %374 = vmatprep.mubr.f32.mxu0 0.0
        %375 = vmatmul.mubr.f32.gmra.mxu0 %v306
        %v376 = vpop.f32.mrf.mxu0
        %v377 = vadd.f32 0.0, %v376
        %v378 = vpop.f32.mrf.mxu0
        %379 = vmatprep.mubr.f32.mxu0 0.0
        %380 = vmatmul.mubr.f32.gmra.mxu0 %v308
        %v381 = vpop.f32.mrf.mxu0
        %v382 = vadd.f32 0.0, %v381
        %v383 = vpop.f32.mrf.mxu0
        %384 = vdwg.mxu0
        %v386 = vsel %vm305, %v281, 0
        %v388 = vsel %vm305, %v279, 0
        %390 = vmatprep.subr.mxu0 0.0
        %391 = vmatpush1.msra.mxu0 0.0
        %392 = vmatprep.subr.mxu0 0.0
        %393 = vmatpush1.msra.mxu0 0.0
        %394 = vmatprep.subr.mxu0 0.0
        %395 = vmatpush1.msra.mxu0 0.0
        %396 = vmatprep.subr.mxu0 0.0
        %397 = vmatpush1.msra.mxu0 0.0
        %398 = vmatprep.subr.mxu0 0.0
        %399 = vmatpush1.msra.mxu0 0.0
        %400 = vmatprep.subr.mxu0 0.0
        %401 = vmatpush1.msra.mxu0 0.0
        %402 = vmatprep.subr.mxu0 0.0
        %403 = vmatpush1.msra.mxu0 0.0
        %404 = vmatprep.subr.mxu0 0.0
        %405 = vmatpush1.msra.mxu0 0.0
        %406 = vmatprep.subr.mxu0 0.0
        %407 = vmatpush1.msra.mxu0 %v295
        %408 = vmatprep.subr.mxu0 0.0
        %409 = vmatpush1.msra.mxu0 %v294
        %410 = vmatprep.subr.mxu0 0.0
        %411 = vmatpush1.msra.mxu0 %v293
        %412 = vmatprep.subr.mxu0 0.0
        %413 = vmatpush1.msra.mxu0 %v292
        %414 = vmatprep.subr.mxu0 0.0
        %415 = vmatpush1.msra.mxu0 %v291
        %416 = vmatprep.subr.mxu0 0.0
        %417 = vmatpush1.msra.mxu0 %v290
        %418 = vmatprep.subr.mxu0 0.0
        %419 = vmatpush1.msra.mxu0 %v289
        %420 = vmatprep.subr.mxu0 0.0
        %421 = vmatpush1.msra.mxu0 %v288
        %422 = vmatprep.subr.mxu0 0.0
        %423 = vmatpush2.msra.mxu0 0.0
        %424 = vmatprep.subr.mxu0 0.0
        %425 = vmatpush2.msra.mxu0 0.0
        %426 = vmatprep.subr.mxu0 0.0
        %427 = vmatpush2.msra.mxu0 0.0
        %428 = vmatprep.subr.mxu0 0.0
        %429 = vmatpush2.msra.mxu0 0.0
        %430 = vmatprep.subr.mxu0 0.0
        %431 = vmatpush2.msra.mxu0 0.0
        %432 = vmatprep.subr.mxu0 0.0
        %433 = vmatpush2.msra.mxu0 0.0
        %434 = vmatprep.subr.mxu0 0.0
        %435 = vmatpush2.msra.mxu0 0.0
        %436 = vmatprep.subr.mxu0 0.0
        %437 = vmatpush2.msra.mxu0 0.0
        %438 = vmatprep.subr.mxu0 0.0
        %439 = vmatpush2.msra.mxu0 0.0
        %440 = vmatprep.subr.mxu0 0.0
        %441 = vmatpush2.msra.mxu0 0.0
        %442 = vmatprep.subr.mxu0 0.0
        %443 = vmatpush2.msra.mxu0 0.0
        %444 = vmatprep.subr.mxu0 0.0
        %445 = vmatpush2.msra.mxu0 0.0
        %446 = vmatprep.subr.mxu0 0.0
        %447 = vmatpush2.msra.mxu0 0.0
        %448 = vmatprep.subr.mxu0 0.0
        %449 = vmatpush2.msra.mxu0 0.0
        %450 = vmatprep.subr.mxu0 0.0
        %451 = vmatpush2.msra.mxu0 0.0
        %452 = vmatprep.subr.mxu0 0.0
        %453 = vmatpush2.msra.mxu0 0.0
        %454 = vmatprep.mubr.f32.mxu0 0.0
        %455 = vmatmul.mubr.f32.gmra.mxu0 %v386
        %v456 = vpop.f32.mrf.mxu0
        %v457 = vadd.f32 %v377, %v456
        %v458 = vpop.f32.mrf.mxu0
        %459 = vmatprep.mubr.f32.mxu0 0.0
        %460 = vmatmul.mubr.f32.gmra.mxu0 %v388
        %v461 = vpop.f32.mrf.mxu0
        %v462 = vadd.f32 %v382, %v461
        %v463 = vpop.f32.mrf.mxu0
        %464 = vdwg.mxu0
        %s465 = scalar_lea.vmem [#allocation5], 128
        %v466 = vld [vmem:[%s465] sm:$0xff]
        %v467 = vld [vmem:[%s465 + $0x8] sm:$0xff]
        %v468 = vld [vmem:[%s465 + $0x10] sm:$0xff]
        %v469 = vld [vmem:[%s465 + $0x18] sm:$0xff]
        %v470 = vld [vmem:[%s465 + $0x20] sm:$0xff]
        %v471 = vld [vmem:[%s465 + $0x28] sm:$0xff]
        %v472 = vld [vmem:[%s465 + $0x30] sm:$0xff]
        %v473 = vld [vmem:[%s465 + $0x38] sm:$0xff]
        %v474 = vsel %vm305, %v285, 0
        %v477 = vsel %vm305, %v287, 0
        %479 = vmatprep.subr.mxu0 0.0
        %480 = vmatpush1.msra.mxu0 0.0
        %481 = vmatprep.subr.mxu0 0.0
        %482 = vmatpush1.msra.mxu0 0.0
        %483 = vmatprep.subr.mxu0 0.0
        %484 = vmatpush1.msra.mxu0 0.0
        %485 = vmatprep.subr.mxu0 0.0
        %486 = vmatpush1.msra.mxu0 0.0
        %487 = vmatprep.subr.mxu0 0.0
        %488 = vmatpush1.msra.mxu0 0.0
        %489 = vmatprep.subr.mxu0 0.0
        %490 = vmatpush1.msra.mxu0 0.0
        %491 = vmatprep.subr.mxu0 0.0
        %492 = vmatpush1.msra.mxu0 0.0
        %493 = vmatprep.subr.mxu0 0.0
        %494 = vmatpush1.msra.mxu0 0.0
        %495 = vmatprep.subr.mxu0 0.0
        %496 = vmatpush1.msra.mxu0 %v473
        %497 = vmatprep.subr.mxu0 0.0
        %498 = vmatpush1.msra.mxu0 %v472
        %499 = vmatprep.subr.mxu0 0.0
        %500 = vmatpush1.msra.mxu0 %v471
        %501 = vmatprep.subr.mxu0 0.0
        %502 = vmatpush1.msra.mxu0 %v470
        %503 = vmatprep.subr.mxu0 0.0
        %504 = vmatpush1.msra.mxu0 %v469
        %505 = vmatprep.subr.mxu0 0.0
        %506 = vmatpush1.msra.mxu0 %v468
        %507 = vmatprep.subr.mxu0 0.0
        %508 = vmatpush1.msra.mxu0 %v467
        %509 = vmatprep.subr.mxu0 0.0
        %510 = vmatpush1.msra.mxu0 %v466
        %511 = vmatprep.subr.mxu0 0.0
        %512 = vmatpush2.msra.mxu0 0.0
        %513 = vmatprep.subr.mxu0 0.0
        %514 = vmatpush2.msra.mxu0 0.0
        %515 = vmatprep.subr.mxu0 0.0
        %516 = vmatpush2.msra.mxu0 0.0
        %517 = vmatprep.subr.mxu0 0.0
        %518 = vmatpush2.msra.mxu0 0.0
        %519 = vmatprep.subr.mxu0 0.0
        %520 = vmatpush2.msra.mxu0 0.0
        %521 = vmatprep.subr.mxu0 0.0
        %522 = vmatpush2.msra.mxu0 0.0
        %523 = vmatprep.subr.mxu0 0.0
        %524 = vmatpush2.msra.mxu0 0.0
        %525 = vmatprep.subr.mxu0 0.0
        %526 = vmatpush2.msra.mxu0 0.0
        %527 = vmatprep.subr.mxu0 0.0
        %528 = vmatpush2.msra.mxu0 0.0
        %529 = vmatprep.subr.mxu0 0.0
        %530 = vmatpush2.msra.mxu0 0.0
        %531 = vmatprep.subr.mxu0 0.0
        %532 = vmatpush2.msra.mxu0 0.0
        %533 = vmatprep.subr.mxu0 0.0
        %534 = vmatpush2.msra.mxu0 0.0
        %535 = vmatprep.subr.mxu0 0.0
        %536 = vmatpush2.msra.mxu0 0.0
        %537 = vmatprep.subr.mxu0 0.0
        %538 = vmatpush2.msra.mxu0 0.0
        %539 = vmatprep.subr.mxu0 0.0
        %540 = vmatpush2.msra.mxu0 0.0
        %541 = vmatprep.subr.mxu0 0.0
        %542 = vmatpush2.msra.mxu0 0.0
        %543 = vmatprep.mubr.f32.mxu0 0.0
        %544 = vmatmul.mubr.f32.gmra.mxu0 %v474
        %v545 = vpop.f32.mrf.mxu0
        %v546 = vadd.f32 0.0, %v545
        %v547 = vpop.f32.mrf.mxu0
        %548 = vmatprep.mubr.f32.mxu0 0.0
        %549 = vmatmul.mubr.f32.gmra.mxu0 %v477
        %v550 = vpop.f32.mrf.mxu0
        %v551 = vadd.f32 0.0, %v550
        %v552 = vpop.f32.mrf.mxu0
        %553 = vdwg.mxu0
        %v554 = vadd.f32 %v457, %v546
        %v555 = vadd.f32 %v462, %v551
        %v556 = vld [vmem:[%s2] sm:$0x1]
        %v558 = vlaneseq
        %v559 = vshrl.u32 %v558, 7
        %v560 = vsub.s32 0, %v559
        %v561 = vrot.slane %v556, %v560
        %v563 = vadd.f32 %v554, %v561
        %v564 = vadd.f32 %v555, %v561
        %v565 = vmax.f32 %v563, 0.0
        %v566 = vmax.f32 %v564, 0.0
        %v569 = vrot.slane %v565, 7
        %v570 = vrot.slane %v566, 7
        %v571 = vsel %vm276, %v569, %v570
        %v574 = vsel %vm276, 0.0, %v569
        %v575 = vrot.slane %v565, 1
        %v576 = vrot.slane %v566, 1
        %v577 = vsel %vm282, %v575, %v576
        %v580 = vsel %vm282, %v576, 0.0
        %v581 = vld [vmem:[#allocation7] sm:$0xff]
        %v582 = vld [vmem:[#allocation7 + $0x8] sm:$0xff]
        %v583 = vld [vmem:[#allocation7 + $0x10] sm:$0xff]
        %v584 = vld [vmem:[#allocation7 + $0x18] sm:$0xff]
        %v585 = vld [vmem:[#allocation7 + $0x20] sm:$0xff]
        %v586 = vld [vmem:[#allocation7 + $0x28] sm:$0xff]
        %v587 = vld [vmem:[#allocation7 + $0x30] sm:$0xff]
        %v588 = vld [vmem:[#allocation7 + $0x38] sm:$0xff]
        %v589 = vld [vmem:[#allocation7 + $0x40] sm:$0xff]
        %v590 = vld [vmem:[#allocation7 + $0x48] sm:$0xff]
        %v591 = vld [vmem:[#allocation7 + $0x50] sm:$0xff]
        %v592 = vld [vmem:[#allocation7 + $0x58] sm:$0xff]
        %v593 = vld [vmem:[#allocation7 + $0x60] sm:$0xff]
        %v594 = vld [vmem:[#allocation7 + $0x68] sm:$0xff]
        %v595 = vld [vmem:[#allocation7 + $0x70] sm:$0xff]
        %v596 = vld [vmem:[#allocation7 + $0x78] sm:$0xff]
        %s597 = scalar_lea.vmem [#allocation7], 128
        %v598 = vld [vmem:[%s597] sm:$0xff]
        %v599 = vld [vmem:[%s597 + $0x8] sm:$0xff]
        %v600 = vld [vmem:[%s597 + $0x10] sm:$0xff]
        %v601 = vld [vmem:[%s597 + $0x18] sm:$0xff]
        %v602 = vld [vmem:[%s597 + $0x20] sm:$0xff]
        %v603 = vld [vmem:[%s597 + $0x28] sm:$0xff]
        %v604 = vld [vmem:[%s597 + $0x30] sm:$0xff]
        %v605 = vld [vmem:[%s597 + $0x38] sm:$0xff]
        %v606 = vld [vmem:[%s597 + $0x40] sm:$0xff]
        %v607 = vld [vmem:[%s597 + $0x48] sm:$0xff]
        %v608 = vld [vmem:[%s597 + $0x50] sm:$0xff]
        %v609 = vld [vmem:[%s597 + $0x58] sm:$0xff]
        %v610 = vld [vmem:[%s597 + $0x60] sm:$0xff]
        %v611 = vld [vmem:[%s597 + $0x68] sm:$0xff]
        %v612 = vld [vmem:[%s597 + $0x70] sm:$0xff]
        %v613 = vld [vmem:[%s597 + $0x78] sm:$0xff]
        %614 = vmatprep.subr.mxu0 0.0
        %615 = vmatpush1.msra.mxu0 %v613
        %616 = vmatprep.subr.mxu0 0.0
        %617 = vmatpush1.msra.mxu0 %v612
        %618 = vmatprep.subr.mxu0 0.0
        %619 = vmatpush1.msra.mxu0 %v611
        %620 = vmatprep.subr.mxu0 0.0
        %621 = vmatpush1.msra.mxu0 %v610
        %622 = vmatprep.subr.mxu0 0.0
        %623 = vmatpush1.msra.mxu0 %v609
        %624 = vmatprep.subr.mxu0 0.0
        %625 = vmatpush1.msra.mxu0 %v608
        %626 = vmatprep.subr.mxu0 0.0
        %627 = vmatpush1.msra.mxu0 %v607
        %628 = vmatprep.subr.mxu0 0.0
        %629 = vmatpush1.msra.mxu0 %v606
        %630 = vmatprep.subr.mxu0 0.0
        %631 = vmatpush1.msra.mxu0 %v605
        %632 = vmatprep.subr.mxu0 0.0
        %633 = vmatpush1.msra.mxu0 %v604
        %634 = vmatprep.subr.mxu0 0.0
        %635 = vmatpush1.msra.mxu0 %v603
        %636 = vmatprep.subr.mxu0 0.0
        %637 = vmatpush1.msra.mxu0 %v602
        %638 = vmatprep.subr.mxu0 0.0
        %639 = vmatpush1.msra.mxu0 %v601
        %640 = vmatprep.subr.mxu0 0.0
        %641 = vmatpush1.msra.mxu0 %v600
        %642 = vmatprep.subr.mxu0 0.0
        %643 = vmatpush1.msra.mxu0 %v599
        %644 = vmatprep.subr.mxu0 0.0
        %645 = vmatpush1.msra.mxu0 %v598
        %646 = vmatprep.subr.mxu0 0.0
        %647 = vmatpush2.msra.mxu0 0.0
        %648 = vmatprep.subr.mxu0 0.0
        %649 = vmatpush2.msra.mxu0 0.0
        %650 = vmatprep.subr.mxu0 0.0
        %651 = vmatpush2.msra.mxu0 0.0
        %652 = vmatprep.subr.mxu0 0.0
        %653 = vmatpush2.msra.mxu0 0.0
        %654 = vmatprep.subr.mxu0 0.0
        %655 = vmatpush2.msra.mxu0 0.0
        %656 = vmatprep.subr.mxu0 0.0
        %657 = vmatpush2.msra.mxu0 0.0
        %658 = vmatprep.subr.mxu0 0.0
        %659 = vmatpush2.msra.mxu0 0.0
        %660 = vmatprep.subr.mxu0 0.0
        %661 = vmatpush2.msra.mxu0 0.0
        %662 = vmatprep.subr.mxu0 0.0
        %663 = vmatpush2.msra.mxu0 0.0
        %664 = vmatprep.subr.mxu0 0.0
        %665 = vmatpush2.msra.mxu0 0.0
        %666 = vmatprep.subr.mxu0 0.0
        %667 = vmatpush2.msra.mxu0 0.0
        %668 = vmatprep.subr.mxu0 0.0
        %669 = vmatpush2.msra.mxu0 0.0
        %670 = vmatprep.subr.mxu0 0.0
        %671 = vmatpush2.msra.mxu0 0.0
        %672 = vmatprep.subr.mxu0 0.0
        %673 = vmatpush2.msra.mxu0 0.0
        %674 = vmatprep.subr.mxu0 0.0
        %675 = vmatpush2.msra.mxu0 0.0
        %676 = vmatprep.subr.mxu0 0.0
        %677 = vmatpush2.msra.mxu0 0.0
        %678 = vmatprep.mubr.f32.mxu0 0.0
        %679 = vmatmul.mubr.f32.gmra.mxu0 %v565
        %v680 = vpop.f32.mrf.mxu0
        %v681 = vadd.f32 0.0, %v680
        %v682 = vpop.f32.mrf.mxu0
        %683 = vmatprep.mubr.f32.mxu0 0.0
        %684 = vmatmul.mubr.f32.gmra.mxu0 %v566
        %v685 = vpop.f32.mrf.mxu0
        %v686 = vadd.f32 0.0, %v685
        %v687 = vpop.f32.mrf.mxu0
        %688 = vdwg.mxu0
        %689 = vmatprep.subr.mxu0 0.0
        %690 = vmatpush1.msra.mxu0 %v596
        %691 = vmatprep.subr.mxu0 0.0
        %692 = vmatpush1.msra.mxu0 %v595
        %693 = vmatprep.subr.mxu0 0.0
        %694 = vmatpush1.msra.mxu0 %v594
        %695 = vmatprep.subr.mxu0 0.0
        %696 = vmatpush1.msra.mxu0 %v593
        %697 = vmatprep.subr.mxu0 0.0
        %698 = vmatpush1.msra.mxu0 %v592
        %699 = vmatprep.subr.mxu0 0.0
        %700 = vmatpush1.msra.mxu0 %v591
        %701 = vmatprep.subr.mxu0 0.0
        %702 = vmatpush1.msra.mxu0 %v590
        %703 = vmatprep.subr.mxu0 0.0
        %704 = vmatpush1.msra.mxu0 %v589
        %705 = vmatprep.subr.mxu0 0.0
        %706 = vmatpush1.msra.mxu0 %v588
        %707 = vmatprep.subr.mxu0 0.0
        %708 = vmatpush1.msra.mxu0 %v587
        %709 = vmatprep.subr.mxu0 0.0
        %710 = vmatpush1.msra.mxu0 %v586
        %711 = vmatprep.subr.mxu0 0.0
        %712 = vmatpush1.msra.mxu0 %v585
        %713 = vmatprep.subr.mxu0 0.0
        %714 = vmatpush1.msra.mxu0 %v584
        %715 = vmatprep.subr.mxu0 0.0
        %716 = vmatpush1.msra.mxu0 %v583
        %717 = vmatprep.subr.mxu0 0.0
        %718 = vmatpush1.msra.mxu0 %v582
        %719 = vmatprep.subr.mxu0 0.0
        %720 = vmatpush1.msra.mxu0 %v581
        %721 = vmatprep.subr.mxu0 0.0
        %722 = vmatpush2.msra.mxu0 0.0
        %723 = vmatprep.subr.mxu0 0.0
        %724 = vmatpush2.msra.mxu0 0.0
        %725 = vmatprep.subr.mxu0 0.0
        %726 = vmatpush2.msra.mxu0 0.0
        %727 = vmatprep.subr.mxu0 0.0
        %728 = vmatpush2.msra.mxu0 0.0
        %729 = vmatprep.subr.mxu0 0.0
        %730 = vmatpush2.msra.mxu0 0.0
        %731 = vmatprep.subr.mxu0 0.0
        %732 = vmatpush2.msra.mxu0 0.0
        %733 = vmatprep.subr.mxu0 0.0
        %734 = vmatpush2.msra.mxu0 0.0
        %735 = vmatprep.subr.mxu0 0.0
        %736 = vmatpush2.msra.mxu0 0.0
        %737 = vmatprep.subr.mxu0 0.0
        %738 = vmatpush2.msra.mxu0 0.0
        %739 = vmatprep.subr.mxu0 0.0
        %740 = vmatpush2.msra.mxu0 0.0
        %741 = vmatprep.subr.mxu0 0.0
        %742 = vmatpush2.msra.mxu0 0.0
        %743 = vmatprep.subr.mxu0 0.0
        %744 = vmatpush2.msra.mxu0 0.0
        %745 = vmatprep.subr.mxu0 0.0
        %746 = vmatpush2.msra.mxu0 0.0
        %747 = vmatprep.subr.mxu0 0.0
        %748 = vmatpush2.msra.mxu0 0.0
        %749 = vmatprep.subr.mxu0 0.0
        %750 = vmatpush2.msra.mxu0 0.0
        %751 = vmatprep.subr.mxu0 0.0
        %752 = vmatpush2.msra.mxu0 0.0
        %753 = vmatprep.mubr.f32.mxu0 0.0
        %754 = vmatmul.mubr.f32.gmra.mxu0 %v574
        %v755 = vpop.f32.mrf.mxu0
        %v756 = vadd.f32 %v681, %v755
        %v757 = vpop.f32.mrf.mxu0
        %758 = vmatprep.mubr.f32.mxu0 0.0
        %759 = vmatmul.mubr.f32.gmra.mxu0 %v571
        %v760 = vpop.f32.mrf.mxu0
        %v761 = vadd.f32 %v686, %v760
        %v762 = vpop.f32.mrf.mxu0
        %763 = vdwg.mxu0
        %s764 = scalar_lea.vmem [#allocation7], 256
        %v765 = vld [vmem:[%s764] sm:$0xff]
        %v766 = vld [vmem:[%s764 + $0x8] sm:$0xff]
        %v767 = vld [vmem:[%s764 + $0x10] sm:$0xff]
        %v768 = vld [vmem:[%s764 + $0x18] sm:$0xff]
        %v769 = vld [vmem:[%s764 + $0x20] sm:$0xff]
        %v770 = vld [vmem:[%s764 + $0x28] sm:$0xff]
        %v771 = vld [vmem:[%s764 + $0x30] sm:$0xff]
        %v772 = vld [vmem:[%s764 + $0x38] sm:$0xff]
        %v773 = vld [vmem:[%s764 + $0x40] sm:$0xff]
        %v774 = vld [vmem:[%s764 + $0x48] sm:$0xff]
        %v775 = vld [vmem:[%s764 + $0x50] sm:$0xff]
        %v776 = vld [vmem:[%s764 + $0x58] sm:$0xff]
        %v777 = vld [vmem:[%s764 + $0x60] sm:$0xff]
        %v778 = vld [vmem:[%s764 + $0x68] sm:$0xff]
        %v779 = vld [vmem:[%s764 + $0x70] sm:$0xff]
        %v780 = vld [vmem:[%s764 + $0x78] sm:$0xff]
        %781 = vmatprep.subr.mxu0 0.0
        %782 = vmatpush1.msra.mxu0 %v780
        %783 = vmatprep.subr.mxu0 0.0
        %784 = vmatpush1.msra.mxu0 %v779
        %785 = vmatprep.subr.mxu0 0.0
        %786 = vmatpush1.msra.mxu0 %v778
        %787 = vmatprep.subr.mxu0 0.0
        %788 = vmatpush1.msra.mxu0 %v777
        %789 = vmatprep.subr.mxu0 0.0
        %790 = vmatpush1.msra.mxu0 %v776
        %791 = vmatprep.subr.mxu0 0.0
        %792 = vmatpush1.msra.mxu0 %v775
        %793 = vmatprep.subr.mxu0 0.0
        %794 = vmatpush1.msra.mxu0 %v774
        %795 = vmatprep.subr.mxu0 0.0
        %796 = vmatpush1.msra.mxu0 %v773
        %797 = vmatprep.subr.mxu0 0.0
        %798 = vmatpush1.msra.mxu0 %v772
        %799 = vmatprep.subr.mxu0 0.0
        %800 = vmatpush1.msra.mxu0 %v771
        %801 = vmatprep.subr.mxu0 0.0
        %802 = vmatpush1.msra.mxu0 %v770
        %803 = vmatprep.subr.mxu0 0.0
        %804 = vmatpush1.msra.mxu0 %v769
        %805 = vmatprep.subr.mxu0 0.0
        %806 = vmatpush1.msra.mxu0 %v768
        %807 = vmatprep.subr.mxu0 0.0
        %808 = vmatpush1.msra.mxu0 %v767
        %809 = vmatprep.subr.mxu0 0.0
        %810 = vmatpush1.msra.mxu0 %v766
        %811 = vmatprep.subr.mxu0 0.0
        %812 = vmatpush1.msra.mxu0 %v765
        %813 = vmatprep.subr.mxu0 0.0
        %814 = vmatpush2.msra.mxu0 0.0
        %815 = vmatprep.subr.mxu0 0.0
        %816 = vmatpush2.msra.mxu0 0.0
        %817 = vmatprep.subr.mxu0 0.0
        %818 = vmatpush2.msra.mxu0 0.0
        %819 = vmatprep.subr.mxu0 0.0
        %820 = vmatpush2.msra.mxu0 0.0
        %821 = vmatprep.subr.mxu0 0.0
        %822 = vmatpush2.msra.mxu0 0.0
        %823 = vmatprep.subr.mxu0 0.0
        %824 = vmatpush2.msra.mxu0 0.0
        %825 = vmatprep.subr.mxu0 0.0
        %826 = vmatpush2.msra.mxu0 0.0
        %827 = vmatprep.subr.mxu0 0.0
        %828 = vmatpush2.msra.mxu0 0.0
        %829 = vmatprep.subr.mxu0 0.0
        %830 = vmatpush2.msra.mxu0 0.0
        %831 = vmatprep.subr.mxu0 0.0
        %832 = vmatpush2.msra.mxu0 0.0
        %833 = vmatprep.subr.mxu0 0.0
        %834 = vmatpush2.msra.mxu0 0.0
        %835 = vmatprep.subr.mxu0 0.0
        %836 = vmatpush2.msra.mxu0 0.0
        %837 = vmatprep.subr.mxu0 0.0
        %838 = vmatpush2.msra.mxu0 0.0
        %839 = vmatprep.subr.mxu0 0.0
        %840 = vmatpush2.msra.mxu0 0.0
        %841 = vmatprep.subr.mxu0 0.0
        %842 = vmatpush2.msra.mxu0 0.0
        %843 = vmatprep.subr.mxu0 0.0
        %844 = vmatpush2.msra.mxu0 0.0
        %845 = vmatprep.mubr.f32.mxu0 0.0
        %846 = vmatmul.mubr.f32.gmra.mxu0 %v577
        %v847 = vpop.f32.mrf.mxu0
        %v848 = vadd.f32 0.0, %v847
        %v849 = vpop.f32.mrf.mxu0
        %850 = vmatprep.mubr.f32.mxu0 0.0
        %851 = vmatmul.mubr.f32.gmra.mxu0 %v580
        %v852 = vpop.f32.mrf.mxu0
        %v853 = vadd.f32 0.0, %v852
        %v854 = vpop.f32.mrf.mxu0
        %855 = vdwg.mxu0
        %v856 = vadd.f32 %v756, %v848
        %v857 = vadd.f32 %v761, %v853
        %v858 = vld [vmem:[%s4] sm:$0x1]
        %v860 = vlaneseq
        %v861 = vshrl.u32 %v860, 7
        %v862 = vsub.s32 0, %v861
        %v863 = vrot.slane %v858, %v862
        %v865 = vadd.f32 %v856, %v863
        %v866 = vadd.f32 %v857, %v863
        %v867 = vmax.f32 %v865, 0.0
        %v868 = vmax.f32 %v866, 0.0
        %869 = vst [vmem:[%s271] sm:$0xff] %v867
        %870 = vst [vmem:[%s271 + $0x8] sm:$0xff] %v868
        %s871 = sand.u32 %s141, 1
        %s872 = scalar_lea.sflag [#allocation4], %s871
        %s873 = sand.u32 %s141, 1
        %s874 = smul.addr %s873, 16
        %s875 = scalar_lea.vmem [#allocation8], %s874
        // Predicated region
        $region53: #{tpu_custom_call.1} parent=39 // pred_check
          %p876 = pneg %p151
        $region54: #{tpu_custom_call.1} parent=39 // pred_check_branch
          %878 = sbr.rel (%p876) target = $region56
        $region55: #{tpu_custom_call.1} parent=39 // pred_region
          %s880 = ssub.s32 256, 256
          %881 = vsyncadd %s872, %s880
          %s882 = smul.addr %s23, 2
          %s883 = smul.addr %s882, 128
          %s884 = scalar_lea.hbm %s5, %s883
          %s885 = sshll.u32 %s875, 4
          %s886 = int_to_ptr.vmem [resolvable:$true] %s885
          %891 = dma.vmem_to_hbm [thread:$0]  %s886, 256, %s884, %s872, 128, 128, 8
        $region56: #{tpu_custom_call.1} parent=39 // pred_fallthru
          _
      $region40: #{tpu_custom_call.1} parent=5 // pred_fallthru
        _
      %p892 = scmp.le.s32.totalorder 2, %s18
      // Predicated region
      $region57: #{tpu_custom_call.1} parent=5 // pred_check
        %p893 = pneg %p892
      $region58: #{tpu_custom_call.1} parent=5 // pred_check_branch
        %895 = sbr.rel (%p893) target = $region60
      $region59: #{tpu_custom_call.1} parent=5 // pred_region
        %s896 = ssub.s32 %s18, 2
        // Predicated region
        $region61: #{tpu_custom_call.1} parent=59 // pred_check
          %p897 = pneg %p157
        $region62: #{tpu_custom_call.1} parent=59 // pred_check_branch
          %899 = sbr.rel (%p897) target = $region64
        $region63: #{tpu_custom_call.1} parent=59 // pred_region
          %s900 = sand.u32 %s142, 1
          %s901 = scalar_lea.sflag [#allocation4], %s900
          %s902 = sand.u32 %s142, 1
          %s903 = smul.addr %s902, 16
          %s904 = scalar_lea.vmem [#allocation8], %s903
          %905 = dma.done %s901, 256
        $region64: #{tpu_custom_call.1} parent=59 // pred_fallthru
          _
      $region60: #{tpu_custom_call.1} parent=5 // pred_fallthru
        _
    $region6: #{tpu_custom_call.1} parent=1 // loop_footer
      %s22 = sadd.s32 1, %s18
    $region7: #{tpu_custom_call.1} parent=1 // loop_footer_branch
      %17 = sbr.rel target = $region3
    $region8: #{tpu_custom_call.1} parent=1 // loop_exit
      _
    %906 = vsyncpa [#allocation3], 1
    %s907 = scalar_lea.sflag [#allocation3], 1
    %908 = vsyncpa %s907, 1
    %909 = vsyncpa [#allocation6], 1
    %910 = vsyncpa [#allocation4], 1
    %s911 = scalar_lea.sflag [#allocation4], 1
    %912 = vsyncpa %s911, 1

</llo_original>
